<compile_context>
chip_gen: v6e
topology: v6e:2x2x1
jax: 0.10.0
libtpu: 0.0.40
codegen_flags: <defaults>
</compile_context>

<pallas_src>
import jax
import jax.numpy as jnp
from jax import lax
from jax.experimental import pallas as pl
from jax.experimental.pallas import tpu as pltpu


# ----------------------------- kernel ---------------------------------------
def linear_x2_kernel(x_ref, w_ref, b_ref, o_ref):
    # x_ref: (tm, tk)  activation tile
    # w_ref: (tn, tk)  weight tile, PyTorch (out, in) layout -- no transpose in HBM
    # b_ref: (1,  tn)  bias tile (block index ignores k -> resident across K loop)
    # o_ref: (tm, tn)  f32 output tile; block index ignores k, so it stays resident
    #                  in VMEM across the K loop and doubles as the accumulator.
    k = pl.program_id(2)

    @pl.when(k == 0)
    def _():
        o_ref[...] = jnp.zeros_like(o_ref)

    # Contract the "in" dim of both operands on the MXU: (tm,tk) x (tn,tk) -> (tm,tn).
    o_ref[...] += lax.dot_general(
        x_ref[...],
        w_ref[...],
        dimension_numbers=(((1,), (1,)), ((), ())),
        preferred_element_type=jnp.float32,
    )

    @pl.when(k == pl.num_programs(2) - 1)
    def _():
        o_ref[...] = (o_ref[...] + b_ref[...]) * 2.0


# --------------------------- tile selection ----------------------------------
_TM_MAX = 1024            # batch rows per tile (multiple of 8)
_TN_MAX = 512             # output-feature tile target
_TK_MAX = 2048            # contraction tile target
_VMEM_BUDGET = 36 << 20   # working-set target; safe under v7x's 64 MiB physical VMEM
_VMEM_LIMIT = 48 << 20    # explicit scoped-VMEM limit handed to Mosaic


def _round_up(x, m):
    return -(-x // m) * m


def _vmem_estimate(tm, tn, tk):
    # f32 bytes: double-buffered x / w / bias input tiles + (2x, conservative) output tile.
    return 4 * (2 * tm * tk + 2 * tn * tk + 2 * tn + 2 * tm * tn)


def _select_tiles(B, in_features, out_features):
    # M: take the whole batch when it fits -- weight HBM traffic scales with grid_i.
    tm = B if B <= _TM_MAX else _TM_MAX

    # K: full extent when small (single K step, no padding); otherwise the largest
    # 128-aligned power-of-two-style divisor of the 128-padded K (pad <= 127 elems).
    if in_features <= _TK_MAX:
        tk, k_pad = in_features, in_features
    else:
        k_pad = _round_up(in_features, 128)
        tk = 128
        for cand in (2048, 1024, 512, 256, 128):
            if k_pad % cand == 0:
                tk = cand
                break

    # N: full extent when small; else a lane-dense 128-multiple tile + cdiv ragged edge.
    tn = out_features if out_features <= _TN_MAX else _TN_MAX

    # v7x megacore: guarantee >= 2 parallel (i, j) grid steps when N allows it.
    grid_i = pl.cdiv(B, tm)
    grid_j = pl.cdiv(out_features, tn)
    if grid_i * grid_j < 2 and tn >= 256:
        tn = max(128, _round_up((tn + 1) // 2, 128))

    # VMEM guard (rarely triggers with the caps above, but keeps us honest).
    while _vmem_estimate(tm, tn, tk) > _VMEM_BUDGET:
        if tm > 256:
            tm = max(256, _round_up(tm // 2, 8))
        elif tk > 128 and tk != in_features and k_pad % (tk // 2) == 0:
            tk //= 2
        elif tn > 128:
            tn = max(128, _round_up(tn // 2, 128))
        else:
            break

    return tm, tn, tk, k_pad


# ------------------------------ wrapper --------------------------------------
@jax.jit
def linear_model_forward(x, weight, bias):
    """Equivalent of: torch.nn.Linear(in, out)(x) * 2

    x:      (B, in_features)            float32
    weight: (out_features, in_features) float32   (PyTorch convention, NOT transposed)
    bias:   (out_features,)             float32
    """
    B, in_features = x.shape
    out_features = weight.shape[0]

    tm, tn, tk, k_pad = _select_tiles(B, in_features, out_features)

    # Zero-pad the reduction dim so tk divides it exactly (keeps accumulation
    # correct).  Ragged M / N edges are handled by cdiv grid blocks instead:
    # out-of-bounds output rows/cols are simply never written back.
    if k_pad != in_features:
        x = jnp.pad(x, ((0, 0), (0, k_pad - in_features)))
        weight = jnp.pad(weight, ((0, 0), (0, k_pad - in_features)))

    b2d = bias.reshape(1, out_features)

    grid = (pl.cdiv(B, tm), pl.cdiv(out_features, tn), k_pad // tk)

    cost = pl.CostEstimate(
        flops=2 * B * k_pad * out_features,
        bytes_accessed=4 * (B * k_pad + out_features * k_pad + B * out_features + out_features),
        transcendentals=0,
    )

    return pl.pallas_call(
        linear_x2_kernel,
        out_shape=jax.ShapeDtypeStruct((B, out_features), x.dtype),
        grid_spec=pltpu.PrefetchScalarGridSpec(
            num_scalar_prefetch=0,
            grid=grid,
            in_specs=[
                pl.BlockSpec((tm, tk), lambda i, j, k: (i, k)),   # x
                pl.BlockSpec((tn, tk), lambda i, j, k: (j, k)),   # weight (out, in)
                pl.BlockSpec((1, tn), lambda i, j, k: (0, j)),    # bias, K-invariant
            ],
            out_specs=pl.BlockSpec((tm, tn), lambda i, j, k: (i, j)),
        ),
        compiler_params=pltpu.CompilerParams(
            dimension_semantics=("parallel", "parallel", "arbitrary"),
            vmem_limit_bytes=_VMEM_LIMIT,
        ),
        cost_estimate=cost,
    )(x, weight, b2d)


def _reference(x, weight, bias):
    return (x @ weight.T + bias) * 2.0


# ------------------------------ self-test ------------------------------------
if __name__ == "__main__":
    key = jax.random.PRNGKey(0)
    k_x, k_w, k_b, k_x2, k_w2, k_b2 = jax.random.split(key, 6)

    # --- small shape consistent with the module (single grid step) ---
    batch, in_features, out_features = 8, 32, 16
    bound = 1.0 / (in_features ** 0.5)
    x = jax.random.normal(k_x, (batch, in_features), dtype=jnp.float32)
    weight = jax.random.uniform(
        k_w, (out_features, in_features), minval=-bound, maxval=bound, dtype=jnp.float32
    )
    bias = jax.random.uniform(
        k_b, (out_features,), minval=-bound, maxval=bound, dtype=jnp.float32
    )

    out = linear_model_forward(x, weight, bias)
    jax.block_until_ready(out)
    ref = _reference(x, weight, bias)
    assert out.shape == (batch, out_features)
    assert jnp.allclose(out, ref, atol=1e-5, rtol=1e-5)

    # --- modest shape exercising K padding, multi-K accumulation, ragged N edge,
    #     and the v7x two-parallel-step split (grid = (1, 2, 5)) ---
    B2, In2, Out2 = 200, 2500, 384
    bound2 = 1.0 / (In2 ** 0.5)
    x2 = jax.random.normal(k_x2, (B2, In2), dtype=jnp.float32)
    w2 = jax.random.uniform(
        k_w2, (Out2, In2), minval=-bound2, maxval=bound2, dtype=jnp.float32
    )
    b2 = jax.random.uniform(
        k_b2, (Out2,), minval=-bound2, maxval=bound2, dtype=jnp.float32
    )

    out2 = linear_model_forward(x2, w2, b2)
    jax.block_until_ready(out2)
    ref2 = _reference(x2, w2, b2)
    assert out2.shape == (B2, Out2)
    assert jnp.allclose(out2, ref2, atol=2e-4, rtol=1e-4)

    print("KERNEL_OK")
</pallas_src>

<mosaic_0001>
module attributes {stable_mosaic.version = 11 : i64} {
  func.func @linear_x2_kernel(%arg0: i32, %arg1: i32, %arg2: i32, %arg3: memref<8x32xf32, #tpu.memory_space<vmem>>, %arg4: memref<16x32xf32, #tpu.memory_space<vmem>>, %arg5: memref<1x16xf32, #tpu.memory_space<vmem>>, %arg6: memref<8x16xf32, #tpu.memory_space<vmem>>) attributes {dimension_semantics = [#tpu.dimension_semantics<parallel>, #tpu.dimension_semantics<parallel>, #tpu.dimension_semantics<arbitrary>], iteration_bounds = array<i64: 1, 1, 1>, scalar_prefetch = 0 : i64, scratch_operands = 0 : i64, tpu.core_type = #tpu.core_type<tc>, window_params = [{transform_indices = @transform_0, window_bounds = array<i64: 8, 32>}, {transform_indices = @transform_1, window_bounds = array<i64: 16, 32>}, {transform_indices = @transform_2, window_bounds = array<i64: 1, 16>}, {transform_indices = @transform_3, window_bounds = array<i64: 8, 16>}]} {
    %c0_i32 = arith.constant 0 : i32
    %0 = arith.cmpi eq, %arg2, %c0_i32 : i32
    %1 = arith.extui %0 : i1 to i32
    %c0_i32_0 = arith.constant 0 : i32
    %2 = arith.cmpi ne, %1, %c0_i32_0 : i32
    scf.if %2 {
      %cst_10 = arith.constant 0.000000e+00 : f32
      %12 = vector.broadcast %cst_10 : f32 to vector<8x16xf32>
      %c0_11 = arith.constant 0 : index
      %c0_12 = arith.constant 0 : index
      %13 = vector.load %arg6[%c0_11, %c0_12] : memref<8x16xf32, #tpu.memory_space<vmem>>, vector<8x16xf32>
      tpu.vector_store %arg6[%c0_11, %c0_12], %12 {strides = array<i32>} : memref<8x16xf32, #tpu.memory_space<vmem>>, vector<8x16xf32>,
    } else {
    }
    %c0 = arith.constant 0 : index
    %c0_1 = arith.constant 0 : index
    %3 = vector.load %arg6[%c0, %c0_1] : memref<8x16xf32, #tpu.memory_space<vmem>>, vector<8x16xf32>
    %c0_2 = arith.constant 0 : index
    %c0_3 = arith.constant 0 : index
    %4 = vector.load %arg3[%c0_2, %c0_3] : memref<8x32xf32, #tpu.memory_space<vmem>>, vector<8x32xf32>
    %c0_4 = arith.constant 0 : index
    %c0_5 = arith.constant 0 : index
    %5 = vector.load %arg4[%c0_4, %c0_5] : memref<16x32xf32, #tpu.memory_space<vmem>>, vector<16x32xf32>
    %cst = arith.constant dense<0.000000e+00> : vector<8x16xf32>
    %6 = tpu.matmul %4, %5, %cst {dimension_numbers = #tpu.dot_dimension_numbers<[1], [1], [0], [0], [0, 0, 1, 0], [], []>} : vector<8x32xf32>, vector<16x32xf32>, vector<8x16xf32> -> vector<8x16xf32>
    %7 = arith.addf %3, %6 : vector<8x16xf32>
    %c0_6 = arith.constant 0 : index
    %c0_7 = arith.constant 0 : index
    %8 = vector.load %arg6[%c0_6, %c0_7] : memref<8x16xf32, #tpu.memory_space<vmem>>, vector<8x16xf32>
    tpu.vector_store %arg6[%c0_6, %c0_7], %7 {strides = array<i32>} : memref<8x16xf32, #tpu.memory_space<vmem>>, vector<8x16xf32>,
    %c0_i32_8 = arith.constant 0 : i32
    %9 = arith.cmpi eq, %arg2, %c0_i32_8 : i32
    %10 = arith.extui %9 : i1 to i32
    %c0_i32_9 = arith.constant 0 : i32
    %11 = arith.cmpi ne, %10, %c0_i32_9 : i32
    scf.if %11 {
      %c0_10 = arith.constant 0 : index
      %c0_11 = arith.constant 0 : index
      %12 = vector.load %arg6[%c0_10, %c0_11] : memref<8x16xf32, #tpu.memory_space<vmem>>, vector<8x16xf32>
      %c0_12 = arith.constant 0 : index
      %c0_13 = arith.constant 0 : index
      %13 = vector.load %arg5[%c0_12, %c0_13] : memref<1x16xf32, #tpu.memory_space<vmem>>, vector<1x16xf32>
      %14 = vector.broadcast %13 : vector<1x16xf32> to vector<8x16xf32>
      %15 = arith.addf %12, %14 : vector<8x16xf32>
      %cst_14 = arith.constant 2.000000e+00 : f32
      %16 = vector.broadcast %cst_14 : f32 to vector<8x16xf32>
      %17 = arith.mulf %15, %16 : vector<8x16xf32>
      %c0_15 = arith.constant 0 : index
      %c0_16 = arith.constant 0 : index
      %18 = vector.load %arg6[%c0_15, %c0_16] : memref<8x16xf32, #tpu.memory_space<vmem>>, vector<8x16xf32>
      tpu.vector_store %arg6[%c0_15, %c0_16], %17 {strides = array<i32>} : memref<8x16xf32, #tpu.memory_space<vmem>>, vector<8x16xf32>,
    } else {
    }
    return
  }
  func.func @transform_0(%arg0: i32, %arg1: i32, %arg2: i32) -> (i32, i32) {
    %c0_i32 = arith.constant 0 : i32
    return %arg0, %arg2 : i32, i32
  }
  func.func @transform_1(%arg0: i32, %arg1: i32, %arg2: i32) -> (i32, i32) {
    %c0_i32 = arith.constant 0 : i32
    return %arg1, %arg2 : i32, i32
  }
  func.func @transform_2(%arg0: i32, %arg1: i32, %arg2: i32) -> (i32, i32) {
    %c0_i32 = arith.constant 0 : i32
    %c0_i32_0 = arith.constant 0 : i32
    return %c0_i32, %arg1 : i32, i32
  }
  func.func @transform_3(%arg0: i32, %arg1: i32, %arg2: i32) -> (i32, i32) {
    %c0_i32 = arith.constant 0 : i32
    return %arg0, %arg1 : i32, i32
  }
}

</mosaic_0001>

<llo_original>
// kernel: linear_model_forward.1
$region0: #{linear_model_forward.1}
  #allocation0 [shape = 'u32[]', space=smem, size = 0x4, offset = 0x4, fixed_abs, tag = 'smem constant byte address 0x4 - core index']
  #allocation1 [shape = 'u32[144,128]{1,0:T(1,128)}', space=vmem, size = 0x12000, scoped, tag = 'internal scratch']
  %s0 = inlined_call_operand.hbm [shape: f32[8,32], index: 0, kind: input, shape index: {}]
  %s1 = inlined_call_operand.hbm [shape: f32[16,32], index: 1, kind: input, shape index: {}]
  %s2 = inlined_call_operand.vmem [shape: f32[1,16], index: 2, kind: input, shape index: {}]
  %s3 = inlined_call_operand.hbm [shape: f32[8,16], index: 3, kind: output, shape index: {}]
  %s4 = sld [smem:[#allocation0]]
  $region38: #{linear_model_forward.1} parent=0
    _
  %s6 = ssub.s32 1, %s4
  %s7 = scalar_select 0, %s6, %s4
  $region1: #{linear_model_forward.1} parent=0
    #allocation2 [shape = 'u8[4096]{0}', space=vmem, size = 0x1000, scoped, tag = 'input window, operand 0, single buffered']
    #allocation3 [shape = 's32[1]{0}', space=sflag, size = 0x4, scoped, tag = 'scoped memory for linear_model_forward.1']
    #allocation4 [shape = 's32[1]{0}', space=sflag, size = 0x4, scoped, tag = 'scoped memory for linear_model_forward.1']
    #allocation5 [shape = 'u8[8192]{0}', space=vmem, size = 0x2000, scoped, tag = 'input window, operand 1, single buffered']
    #allocation6 [shape = 's32[1]{0}', space=sflag, size = 0x4, scoped, tag = 'scoped memory for linear_model_forward.1']
    #allocation7 [shape = 'u8[4096]{0}', space=vmem, size = 0x1000, scoped, tag = 'output window, operand 0, single buffered']
    %8 = vsyncpa [#allocation3], 0
    %9 = vsyncpa [#allocation6], 0
    %10 = vsyncpa [#allocation4], 0
    // Predicated region
    $region2: #{linear_model_forward.1} parent=1 // pred_check
      _
    $region3: #{linear_model_forward.1} parent=1 // pred_check_branch
      %12 = sbr.rel (0) target = $region5
    $region4: #{linear_model_forward.1} parent=1 // pred_region
      %s14 = ssub.s32 128, 128
      %15 = vsyncadd [#allocation3], %s14
      %s17 = sshll.u32 [#allocation2], 4
      %s18 = int_to_ptr.vmem [resolvable:$true] %s17
      %20 = dma.hbm_to_vmem [thread:$0]  %s0, 128, %s18, [#allocation3]
    $region5: #{linear_model_forward.1} parent=1 // pred_fallthru
      _
    // Predicated region
    $region6: #{linear_model_forward.1} parent=1 // pred_check
      _
    $region7: #{linear_model_forward.1} parent=1 // pred_check_branch
      %22 = sbr.rel (0) target = $region9
    $region8: #{linear_model_forward.1} parent=1 // pred_region
      %s24 = ssub.s32 256, 256
      %25 = vsyncadd [#allocation6], %s24
      %s26 = sshll.u32 [#allocation5], 4
      %s27 = int_to_ptr.vmem [resolvable:$true] %s26
      %32 = dma.hbm_to_vmem [thread:$0]  %s1, 256, %s27, [#allocation6], 128, 128, 8
    $region9: #{linear_model_forward.1} parent=1 // pred_fallthru
      _
    // Predicated region
    $region10: #{linear_model_forward.1} parent=1 // pred_check
      _
    $region11: #{linear_model_forward.1} parent=1 // pred_check_branch
      %34 = sbr.rel (0) target = $region13
    $region12: #{linear_model_forward.1} parent=1 // pred_region
      _
    $region13: #{linear_model_forward.1} parent=1 // pred_fallthru
      _
    // Predicated region
    $region14: #{linear_model_forward.1} parent=1 // pred_check
      _
    $region15: #{linear_model_forward.1} parent=1 // pred_check_branch
      %36 = sbr.rel (0) target = $region17
    $region16: #{linear_model_forward.1} parent=1 // pred_region
      %37 = dma.done [#allocation3], 128
    $region17: #{linear_model_forward.1} parent=1 // pred_fallthru
      _
    // Predicated region
    $region18: #{linear_model_forward.1} parent=1 // pred_check
      _
    $region19: #{linear_model_forward.1} parent=1 // pred_check_branch
      %39 = sbr.rel (0) target = $region21
    $region20: #{linear_model_forward.1} parent=1 // pred_region
      %40 = dma.done [#allocation6], 256
    $region21: #{linear_model_forward.1} parent=1 // pred_fallthru
      _
    %p41 = scmp.eq.s32.totalorder 0, 0
    // Predicated region
    $region22: #{linear_model_forward.1} parent=1 // pred_check
      %p42 = pneg %p41
    $region23: #{linear_model_forward.1} parent=1 // pred_check_branch
      %44 = sbr.rel (%p42) target = $region25
    $region24: #{linear_model_forward.1} parent=1 // pred_region
      %vm45 = vcmask 130048
      %46 = vst.msk [vmem:[#allocation7] sm:$0xff] %vm45, 0.0
    $region25: #{linear_model_forward.1} parent=1 // pred_fallthru
      _
    %v47 = vld [vmem:[#allocation7] sm:$0xff]
    %v48 = vld [vmem:[#allocation2] sm:$0xff]
    %v49 = vld [vmem:[#allocation5] sm:$0xff]
    %v50 = vld [vmem:[#allocation5 + $0x8] sm:$0xff]
    %vm51 = vcmask 261120
    %v53 = vsel %vm51, %v48, 0
    %v56 = vsel %vm51, %v49, 0
    %v59 = vsel %vm51, %v50, 0
    %61 = vmatprep.subr.mxu0 0.0
    %62 = vmatpush1.xpose.msra.mxu0 0.0
    %63 = vmatprep.subr.mxu0 0.0
    %64 = vmatpush1.xpose.msra.mxu0 0.0
    %65 = vmatprep.subr.mxu0 0.0
    %66 = vmatpush1.xpose.msra.mxu0 0.0
    %67 = vmatprep.subr.mxu0 0.0
    %68 = vmatpush1.xpose.msra.mxu0 0.0
    %69 = vmatprep.subr.mxu0 0.0
    %70 = vmatpush1.xpose.msra.mxu0 0.0
    %71 = vmatprep.subr.mxu0 0.0
    %72 = vmatpush1.xpose.msra.mxu0 0.0
    %73 = vmatprep.subr.mxu0 0.0
    %74 = vmatpush1.xpose.msra.mxu0 0.0
    %75 = vmatprep.subr.mxu0 0.0
    %76 = vmatpush1.xpose.msra.mxu0 0.0
    %77 = vmatprep.subr.mxu0 0.0
    %78 = vmatpush1.xpose.msra.mxu0 0.0
    %79 = vmatprep.subr.mxu0 0.0
    %80 = vmatpush1.xpose.msra.mxu0 0.0
    %81 = vmatprep.subr.mxu0 0.0
    %82 = vmatpush1.xpose.msra.mxu0 0.0
    %83 = vmatprep.subr.mxu0 0.0
    %84 = vmatpush1.xpose.msra.mxu0 0.0
    %85 = vmatprep.subr.mxu0 0.0
    %86 = vmatpush1.xpose.msra.mxu0 0.0
    %87 = vmatprep.subr.mxu0 0.0
    %88 = vmatpush1.xpose.msra.mxu0 0.0
    %89 = vmatprep.subr.mxu0 0.0
    %90 = vmatpush1.xpose.msra.mxu0 %v59
    %91 = vmatprep.subr.mxu0 0.0
    %92 = vmatpush1.xpose.msra.mxu0 %v56
    %93 = vmatprep.subr.mxu0 0.0
    %94 = vmatpush2.xpose.msra.mxu0 0.0
    %95 = vmatprep.subr.mxu0 0.0
    %96 = vmatpush2.xpose.msra.mxu0 0.0
    %97 = vmatprep.subr.mxu0 0.0
    %98 = vmatpush2.xpose.msra.mxu0 0.0
    %99 = vmatprep.subr.mxu0 0.0
    %100 = vmatpush2.xpose.msra.mxu0 0.0
    %101 = vmatprep.subr.mxu0 0.0
    %102 = vmatpush2.xpose.msra.mxu0 0.0
    %103 = vmatprep.subr.mxu0 0.0
    %104 = vmatpush2.xpose.msra.mxu0 0.0
    %105 = vmatprep.subr.mxu0 0.0
    %106 = vmatpush2.xpose.msra.mxu0 0.0
    %107 = vmatprep.subr.mxu0 0.0
    %108 = vmatpush2.xpose.msra.mxu0 0.0
    %109 = vmatprep.subr.mxu0 0.0
    %110 = vmatpush2.xpose.msra.mxu0 0.0
    %111 = vmatprep.subr.mxu0 0.0
    %112 = vmatpush2.xpose.msra.mxu0 0.0
    %113 = vmatprep.subr.mxu0 0.0
    %114 = vmatpush2.xpose.msra.mxu0 0.0
    %115 = vmatprep.subr.mxu0 0.0
    %116 = vmatpush2.xpose.msra.mxu0 0.0
    %117 = vmatprep.subr.mxu0 0.0
    %118 = vmatpush2.xpose.msra.mxu0 0.0
    %119 = vmatprep.subr.mxu0 0.0
    %120 = vmatpush2.xpose.msra.mxu0 0.0
    %121 = vmatprep.subr.mxu0 0.0
    %122 = vmatpush2.xpose.msra.mxu0 0.0
    %123 = vmatprep.subr.mxu0 0.0
    %124 = vmatpush2.xpose.msra.mxu0 0.0
    %125 = vmatprep.mubr.f32.mxu0 0.0
    %126 = vmatmul.mubr.f32.gmra.mxu0 %v53
    %v127 = vpop.f32.mrf.mxu0
    %v128 = vadd.f32 0.0, %v127
    %v129 = vpop.f32.mrf.mxu0
    %130 = vdwg.mxu0
    %v131 = vadd.f32 %v47, %v128
    %vm132 = vcmask 130048
    %133 = vst.msk [vmem:[#allocation7] sm:$0xff] %vm132, %v131
    // Predicated region
    $region26: #{linear_model_forward.1} parent=1 // pred_check
      %p134 = pneg %p41
    $region27: #{linear_model_forward.1} parent=1 // pred_check_branch
      %136 = sbr.rel (%p134) target = $region29
    $region28: #{linear_model_forward.1} parent=1 // pred_region
      %v137 = vld [vmem:[#allocation7] sm:$0xff]
      %v138 = vld [vmem:[%s2] sm:$0x1]
      %v140 = vlaneseq
      %v141 = vshrl.u32 %v140, 7
      %v142 = vsub.s32 0, %v141
      %v143 = vrot.slane %v138, %v142
      %v145 = vadd.f32 %v137, %v143
      %v146 = vmul.f32 %v145, 2.0
      %147 = vst.msk [vmem:[#allocation7] sm:$0xff] %vm132, %v146
    $region29: #{linear_model_forward.1} parent=1 // pred_fallthru
      _
    // Predicated region
    $region30: #{linear_model_forward.1} parent=1 // pred_check
      _
    $region31: #{linear_model_forward.1} parent=1 // pred_check_branch
      %149 = sbr.rel (0) target = $region33
    $region32: #{linear_model_forward.1} parent=1 // pred_region
      %s151 = ssub.s32 128, 128
      %152 = vsyncadd [#allocation4], %s151
      %s154 = sshll.u32 [#allocation7], 4
      %s155 = int_to_ptr.vmem [resolvable:$true] %s154
      %157 = dma.vmem_to_hbm [thread:$0]  %s155, 128, %s3, [#allocation4]
    $region33: #{linear_model_forward.1} parent=1 // pred_fallthru
      _
    // Predicated region
    $region34: #{linear_model_forward.1} parent=1 // pred_check
      _
    $region35: #{linear_model_forward.1} parent=1 // pred_check_branch
      %159 = sbr.rel (0) target = $region37
    $region36: #{linear_model_forward.1} parent=1 // pred_region
      %160 = dma.done [#allocation4], 128
    $region37: #{linear_model_forward.1} parent=1 // pred_fallthru
      _
    %161 = vsyncpa [#allocation3], 1
    %162 = vsyncpa [#allocation6], 1
    %163 = vsyncpa [#allocation4], 1

</llo_original>
